<compile_context>
chip_gen: v6e
topology: v6e:2x2x1
jax: 0.10.0
libtpu: 0.0.40
codegen_flags: <defaults>
</compile_context>

<pallas_src>
import functools

import jax
import jax.numpy as jnp
from jax.experimental import pallas as pl
from jax.experimental.pallas import tpu as pltpu


def _focal_tile(pred_ref, tgt_ref, alpha_ref, *, gamma, n_valid, w_total):
    """Per-tile focal loss, returns a dense (8, W_TILE) f32 array.

    pred_ref : (C, 8, W_TILE) logits (native dtype, upcast here)
    tgt_ref  : (8, W_TILE) int32 targets
    alpha_ref: (C,) float32 in SMEM
    Invalid positions (block overrun past W_total, or padded samples >= n_valid)
    are forced to exactly 0 before returning.
    """
    c = pred_ref.shape[0]
    tgt = tgt_ref[...]                                        # (8, W)
    x = [pred_ref[cls].astype(jnp.float32) for cls in range(c)]

    # Numerically-stable log-sum-exp over classes: elementwise across C vregs
    # (pure VPU / EUP, no cross-sublane XLU reduce).
    m = x[0]
    for cls in range(1, c):
        m = jnp.maximum(m, x[cls])
    s = jnp.exp(x[0] - m)
    for cls in range(1, c):
        s = s + jnp.exp(x[cls] - m)
    lse = m + jnp.log(s)

    # Gather x[target] and alpha[target] with an unrolled select chain.
    x_t = jnp.zeros_like(m)
    alpha_t = jnp.zeros_like(m)
    for cls in range(c):
        sel = tgt == cls
        x_t = jnp.where(sel, x[cls], x_t)
        alpha_t = jnp.where(sel, alpha_ref[cls], alpha_t)     # SMEM scalar splat

    logpt = x_t - lse          # gathered log_softmax, (C, W) never materialized
    ce = -logpt
    pt = jnp.exp(logpt)
    if isinstance(gamma, int):
        mod = (1.0 - pt) ** gamma                     # lax.integer_pow: pure VPU
    else:
        mod = jnp.clip(1.0 - pt, 0.0, 1.0) ** gamma   # guard float pow
    focal = alpha_t * mod * ce                        # (8, W)

    # Mask the ragged tail.  Garbage logits in the overrun region of a partial
    # block can be Inf/NaN and 0*NaN = NaN, so an explicit select is required.
    w_blk = focal.shape[1]
    i = pl.program_id(0)
    sub = jax.lax.broadcasted_iota(jnp.int32, focal.shape, 0)
    col = jax.lax.broadcasted_iota(jnp.int32, focal.shape, 1) + i * w_blk
    sample = sub * w_total + col
    valid = (col < w_total) & (sample < n_valid)
    return jnp.where(valid, focal, 0.0)


def _focal_kernel_none(pred_ref, tgt_ref, alpha_ref, out_ref, *,
                       gamma, n_valid, w_total):
    out_ref[...] = _focal_tile(pred_ref, tgt_ref, alpha_ref,
                               gamma=gamma, n_valid=n_valid, w_total=w_total)


def _focal_kernel_reduce(pred_ref, tgt_ref, alpha_ref, out_ref, acc_ref, *,
                         gamma, n_valid, w_total, inv_scale):
    i = pl.program_id(0)

    @pl.when(i == 0)
    def _():
        acc_ref[...] = jnp.zeros_like(acc_ref)

    # Vreg-shaped accumulator: elementwise add per tile; no per-step cross-lane
    # reduce on the serialized accumulator chain.
    acc_ref[...] += _focal_tile(pred_ref, tgt_ref, alpha_ref,
                                gamma=gamma, n_valid=n_valid, w_total=w_total)

    @pl.when(i == pl.num_programs(0) - 1)
    def _():
        out_ref[...] = jnp.sum(acc_ref[...], keepdims=True) * inv_scale


def _choose_w_tile(w_total, c, itemsize):
    """Lane width of a tile: ~2 MiB of pred per pipeline buffer.

    W_TILE = 16384 lanes (128K samples) for f32/C=4, 32768 for bf16.  Double-
    buffered pred + target + out + accumulator stays under ~7-9 MiB -> safe on
    every generation's default scoped VMEM (v5e 16 MiB ... v7x 32 of 64 MiB).
    """
    target_pred_bytes = 2 * 1024 * 1024
    w = target_pred_bytes // max(1, c * 8 * itemsize)
    w = max(128, (w // 128) * 128)
    if w >= w_total:
        return w_total          # single full-extent tile (any width is legal)
    return w                    # multiple of 128; last block may be partial


def multi_class_focal_loss(pred, target, alpha, *, gamma=1, reduction="mean",
                           tile_lanes=None):
    """Pallas equivalent of MultiClassFocalLossWithAlpha.forward(pred, target)."""
    n, c = pred.shape
    alpha1d = jnp.asarray(alpha, jnp.float32).reshape(c)

    # gamma is a static hyperparameter; integer-valued -> integer_pow path.
    g = float(gamma)
    gamma_static = int(g) if g.is_integer() else g

    # Pad the batch only to the next multiple of 8 (<= 7 rows, done pre-transpose
    # so it can fuse); padded samples are masked out inside the kernel.
    n8 = ((n + 7) // 8) * 8
    if n8 != n:
        pred = jnp.pad(pred, ((0, n8 - n), (0, 0)))
        target = jnp.pad(target, (0, n8 - n), constant_values=0)
    w_total = n8 // 8

    # Sublane+lane dense layout: sample k lives at (k // W, k % W).
    # NOTE: the transpose is one extra HBM pass if it does not fuse into pred's
    # producer; emit pred pre-transposed upstream to avoid it entirely.
    pred_r = pred.T.reshape(c, 8, w_total)
    target_r = target.astype(jnp.int32).reshape(8, w_total)

    if tile_lanes is None:
        w_tile = _choose_w_tile(w_total, c, jnp.dtype(pred.dtype).itemsize)
    else:
        w_tile = w_total if tile_lanes >= w_total else tile_lanes
    num_tiles = pl.cdiv(w_total, w_tile)

    kwargs = dict(gamma=gamma_static, n_valid=n, w_total=w_total)
    in_specs = [
        pl.BlockSpec((c, 8, w_tile), lambda i: (0, 0, i)),           # pred tile
        pl.BlockSpec((8, w_tile), lambda i: (0, i)),                 # target tile
        pl.BlockSpec(memory_space=pltpu.MemorySpace.SMEM),           # alpha (C,)
    ]

    if reduction in ("mean", "sum"):
        inv_scale = (1.0 / n) if reduction == "mean" else 1.0
        kern = functools.partial(_focal_kernel_reduce, inv_scale=inv_scale, **kwargs)
        # TODO(synk): on v7x, split this 'arbitrary' reduction across both
        # TensorCores (leading parallel axis of 2 + per-core partials).
        out = pl.pallas_call(
            kern,
            out_shape=jax.ShapeDtypeStruct((1, 1), jnp.float32),
            grid=(num_tiles,),
            in_specs=in_specs,
            out_specs=pl.BlockSpec((1, 1), lambda i: (0, 0)),
            scratch_shapes=[pltpu.VMEM((8, w_tile), jnp.float32)],
            compiler_params=pltpu.CompilerParams(
                dimension_semantics=("arbitrary",)),
        )(pred_r, target_r, alpha1d)
        return out[0, 0]

    # reduction == 'none' (PyTorch falls through the same way for other values)
    kern = functools.partial(_focal_kernel_none, **kwargs)
    out = pl.pallas_call(
        kern,
        out_shape=jax.ShapeDtypeStruct((8, w_total), jnp.float32),
        grid=(num_tiles,),
        in_specs=in_specs,
        out_specs=pl.BlockSpec((8, w_tile), lambda i: (0, i)),       # dense output
        compiler_params=pltpu.CompilerParams(
            dimension_semantics=("parallel",)),
    )(pred_r, target_r, alpha1d)
    return out.reshape(n8)[:n]


def _reference(pred, target, alpha, gamma=1, reduction="mean"):
    # Pure-JAX reference mirroring the PyTorch forward.
    log_softmax = jax.nn.log_softmax(pred.astype(jnp.float32), axis=1)
    logpt = jnp.take_along_axis(log_softmax, target.reshape(-1, 1), axis=1).reshape(-1)
    ce = -logpt
    pt = jnp.exp(logpt)
    a = jnp.asarray(alpha, jnp.float32)[target]
    fl = a * (1.0 - pt) ** gamma * ce
    if reduction == "mean":
        return jnp.mean(fl)
    if reduction == "sum":
        return jnp.sum(fl)
    return fl


def _check(pred, target, alpha, gamma, tile_lanes=None):
    for reduction in ("mean", "sum", "none"):
        out = multi_class_focal_loss(pred, target, alpha, gamma=gamma,
                                     reduction=reduction, tile_lanes=tile_lanes)
        jax.block_until_ready(out)
        ref = _reference(pred, target, alpha, gamma=gamma, reduction=reduction)
        assert jnp.allclose(out, ref, rtol=1e-4, atol=1e-6), (reduction, out, ref)


if __name__ == "__main__":
    num_classes = 4
    gamma = 2
    alpha = jnp.array([0.1, 0.2, 0.3, 0.4], dtype=jnp.float32)
    key = jax.random.PRNGKey(0)

    # Case 1: tiny batch consistent with the module (batch=8, classes=4).
    k1, k2, k3, k4, k5, k6 = jax.random.split(key, 6)
    pred = jax.random.normal(k1, (8, num_classes), dtype=jnp.float32)
    target = jax.random.randint(k2, (8,), 0, num_classes, dtype=jnp.int32)
    _check(pred, target, alpha, gamma)

    # Case 2: batch not a multiple of 8 -> exercises the in-kernel tail mask.
    pred = jax.random.normal(k3, (203, num_classes), dtype=jnp.float32)
    target = jax.random.randint(k4, (203,), 0, num_classes, dtype=jnp.int32)
    _check(pred, target, alpha, gamma)

    # Case 3: forced small tile -> multiple grid steps + ragged last block.
    pred = jax.random.normal(k5, (2067, num_classes), dtype=jnp.float32)
    target = jax.random.randint(k6, (2067,), 0, num_classes, dtype=jnp.int32)
    _check(pred, target, alpha, gamma, tile_lanes=128)

    print("KERNEL_OK")
</pallas_src>

<mosaic_0001>
module attributes {stable_mosaic.version = 11 : i64} {
  func.func @_focal_kernel_reduce(%arg0: i32, %arg1: memref<4x8x1xf32, #tpu.memory_space<vmem>>, %arg2: memref<8x1xi32, #tpu.memory_space<vmem>>, %arg3: memref<4xf32, #tpu.memory_space<smem>>, %arg4: memref<1x1xf32, #tpu.memory_space<vmem>>, %arg5: memref<8x1xf32, #tpu.memory_space<vmem>>) attributes {dimension_semantics = [#tpu.dimension_semantics<arbitrary>], iteration_bounds = array<i64: 1>, scalar_prefetch = 0 : i64, scratch_operands = 1 : i64, tpu.core_type = #tpu.core_type<tc>, window_params = [{transform_indices = @transform_0, window_bounds = array<i64: 4, 8, 1>}, {transform_indices = @transform_1, window_bounds = array<i64: 8, 1>}, {transform_indices = @transform_2, window_bounds = array<i64: 4>}, {pipeline_mode = #tpu.pipeline_mode<synchronous>, transform_indices = @transform_3, window_bounds = array<i64: 1, 1>}]} {
    %c0_i32 = arith.constant 0 : i32
    %0 = arith.cmpi eq, %arg0, %c0_i32 : i32
    %1 = arith.extui %0 : i1 to i32
    %c0_i32_0 = arith.constant 0 : i32
    %2 = arith.cmpi ne, %1, %c0_i32_0 : i32
    scf.if %2 {
      %cst_29 = arith.constant 0.000000e+00 : f32
      %84 = vector.broadcast %cst_29 : f32 to vector<8x1xf32>
      %c0_30 = arith.constant 0 : index
      %c0_31 = arith.constant 0 : index
      %85 = vector.load %arg5[%c0_30, %c0_31] : memref<8x1xf32, #tpu.memory_space<vmem>>, vector<8x1xf32>
      tpu.vector_store %arg5[%c0_30, %c0_31], %84 {strides = array<i32>} : memref<8x1xf32, #tpu.memory_space<vmem>>, vector<8x1xf32>,
    } else {
    }
    %c0 = arith.constant 0 : index
    %c0_1 = arith.constant 0 : index
    %3 = vector.load %arg5[%c0, %c0_1] : memref<8x1xf32, #tpu.memory_space<vmem>>, vector<8x1xf32>
    %c0_2 = arith.constant 0 : index
    %c0_3 = arith.constant 0 : index
    %4 = vector.load %arg2[%c0_2, %c0_3] : memref<8x1xi32, #tpu.memory_space<vmem>>, vector<8x1xi32>
    %c0_4 = arith.constant 0 : index
    %c0_5 = arith.constant 0 : index
    %c0_6 = arith.constant 0 : index
    %5 = vector.load %arg1[%c0_4, %c0_5, %c0_6] : memref<4x8x1xf32, #tpu.memory_space<vmem>>, vector<1x8x1xf32>
    %6 = vector.shape_cast %5 : vector<1x8x1xf32> to vector<8x1xf32>
    %c1 = arith.constant 1 : index
    %c0_7 = arith.constant 0 : index
    %c0_8 = arith.constant 0 : index
    %7 = vector.load %arg1[%c1, %c0_7, %c0_8] : memref<4x8x1xf32, #tpu.memory_space<vmem>>, vector<1x8x1xf32>
    %8 = vector.shape_cast %7 : vector<1x8x1xf32> to vector<8x1xf32>
    %c2 = arith.constant 2 : index
    %c0_9 = arith.constant 0 : index
    %c0_10 = arith.constant 0 : index
    %9 = vector.load %arg1[%c2, %c0_9, %c0_10] : memref<4x8x1xf32, #tpu.memory_space<vmem>>, vector<1x8x1xf32>
    %10 = vector.shape_cast %9 : vector<1x8x1xf32> to vector<8x1xf32>
    %c3 = arith.constant 3 : index
    %c0_11 = arith.constant 0 : index
    %c0_12 = arith.constant 0 : index
    %11 = vector.load %arg1[%c3, %c0_11, %c0_12] : memref<4x8x1xf32, #tpu.memory_space<vmem>>, vector<1x8x1xf32>
    %12 = vector.shape_cast %11 : vector<1x8x1xf32> to vector<8x1xf32>
    %13 = arith.maximumf %6, %8 : vector<8x1xf32>
    %14 = arith.maximumf %13, %10 : vector<8x1xf32>
    %15 = arith.maximumf %14, %12 : vector<8x1xf32>
    %16 = arith.subf %6, %15 : vector<8x1xf32>
    %17 = math.exp %16 : vector<8x1xf32>
    %18 = arith.subf %8, %15 : vector<8x1xf32>
    %19 = math.exp %18 : vector<8x1xf32>
    %20 = arith.addf %17, %19 : vector<8x1xf32>
    %21 = arith.subf %10, %15 : vector<8x1xf32>
    %22 = math.exp %21 : vector<8x1xf32>
    %23 = arith.addf %20, %22 : vector<8x1xf32>
    %24 = arith.subf %12, %15 : vector<8x1xf32>
    %25 = math.exp %24 : vector<8x1xf32>
    %26 = arith.addf %23, %25 : vector<8x1xf32>
    %27 = math.log %26 : vector<8x1xf32>
    %28 = arith.addf %15, %27 : vector<8x1xf32>
    %cst = arith.constant 0.000000e+00 : f32
    %29 = vector.broadcast %cst : f32 to vector<8x1xf32>
    %cst_13 = arith.constant 0.000000e+00 : f32
    %30 = vector.broadcast %cst_13 : f32 to vector<8x1xf32>
    %c0_i32_14 = arith.constant 0 : i32
    %31 = vector.broadcast %c0_i32_14 : i32 to vector<8x1xi32>
    %32 = arith.cmpi eq, %4, %31 : vector<8x1xi32>
    %33 = arith.select %32, %6, %29 : vector<8x1xi1>, vector<8x1xf32>
    %c0_15 = arith.constant 0 : index
    %34 = memref.load %arg3[%c0_15] : memref<4xf32, #tpu.memory_space<smem>>
    %35 = vector.broadcast %34 : f32 to vector<8x1xf32>
    %36 = arith.select %32, %35, %30 : vector<8x1xi1>, vector<8x1xf32>
    %c1_i32 = arith.constant 1 : i32
    %37 = vector.broadcast %c1_i32 : i32 to vector<8x1xi32>
    %38 = arith.cmpi eq, %4, %37 : vector<8x1xi32>
    %39 = arith.select %38, %8, %33 : vector<8x1xi1>, vector<8x1xf32>
    %c1_16 = arith.constant 1 : index
    %40 = memref.load %arg3[%c1_16] : memref<4xf32, #tpu.memory_space<smem>>
    %41 = vector.broadcast %40 : f32 to vector<8x1xf32>
    %42 = arith.select %38, %41, %36 : vector<8x1xi1>, vector<8x1xf32>
    %c2_i32 = arith.constant 2 : i32
    %43 = vector.broadcast %c2_i32 : i32 to vector<8x1xi32>
    %44 = arith.cmpi eq, %4, %43 : vector<8x1xi32>
    %45 = arith.select %44, %10, %39 : vector<8x1xi1>, vector<8x1xf32>
    %c2_17 = arith.constant 2 : index
    %46 = memref.load %arg3[%c2_17] : memref<4xf32, #tpu.memory_space<smem>>
    %47 = vector.broadcast %46 : f32 to vector<8x1xf32>
    %48 = arith.select %44, %47, %42 : vector<8x1xi1>, vector<8x1xf32>
    %c3_i32 = arith.constant 3 : i32
    %49 = vector.broadcast %c3_i32 : i32 to vector<8x1xi32>
    %50 = arith.cmpi eq, %4, %49 : vector<8x1xi32>
    %51 = arith.select %50, %12, %45 : vector<8x1xi1>, vector<8x1xf32>
    %c3_18 = arith.constant 3 : index
    %52 = memref.load %arg3[%c3_18] : memref<4xf32, #tpu.memory_space<smem>>
    %53 = vector.broadcast %52 : f32 to vector<8x1xf32>
    %54 = arith.select %50, %53, %48 : vector<8x1xi1>, vector<8x1xf32>
    %55 = arith.subf %51, %28 : vector<8x1xf32>
    %cst_19 = arith.constant 0.000000e+00 : f32
    %56 = vector.broadcast %cst_19 : f32 to vector<8x1xf32>
    %57 = arith.subf %56, %55 : vector<8x1xf32>
    %58 = math.exp %55 : vector<8x1xf32>
    %cst_20 = arith.constant 1.000000e+00 : f32
    %59 = vector.broadcast %cst_20 : f32 to vector<8x1xf32>
    %60 = arith.subf %59, %58 : vector<8x1xf32>
    %61 = arith.mulf %60, %60 : vector<8x1xf32>
    %62 = arith.mulf %54, %61 : vector<8x1xf32>
    %63 = arith.mulf %62, %57 : vector<8x1xf32>
    %64 = tpu.iota {dimensions = array<i32: 0>} : vector<8x1xi32>
    %65 = tpu.iota {dimensions = array<i32: 1>} : vector<8x1xi32>
    %c1_i32_21 = arith.constant 1 : i32
    %66 = arith.muli %arg0, %c1_i32_21 : i32
    %67 = vector.broadcast %66 : i32 to vector<8x1xi32>
    %68 = arith.addi %65, %67 : vector<8x1xi32>
    %c1_i32_22 = arith.constant 1 : i32
    %69 = vector.broadcast %c1_i32_22 : i32 to vector<8x1xi32>
    %70 = arith.muli %64, %69 : vector<8x1xi32>
    %71 = arith.addi %70, %68 : vector<8x1xi32>
    %c1_i32_23 = arith.constant 1 : i32
    %72 = vector.broadcast %c1_i32_23 : i32 to vector<8x1xi32>
    %73 = arith.cmpi slt, %68, %72 : vector<8x1xi32>
    %c8_i32 = arith.constant 8 : i32
    %74 = vector.broadcast %c8_i32 : i32 to vector<8x1xi32>
    %75 = arith.cmpi slt, %71, %74 : vector<8x1xi32>
    %76 = arith.andi %73, %75 : vector<8x1xi1>
    %cst_24 = arith.constant 0.000000e+00 : f32
    %77 = vector.broadcast %cst_24 : f32 to vector<8x1xf32>
    %78 = arith.select %76, %63, %77 : vector<8x1xi1>, vector<8x1xf32>
    %79 = arith.addf %3, %78 : vector<8x1xf32>
    %c0_25 = arith.constant 0 : index
    %c0_26 = arith.constant 0 : index
    %80 = vector.load %arg5[%c0_25, %c0_26] : memref<8x1xf32, #tpu.memory_space<vmem>>, vector<8x1xf32>
    tpu.vector_store %arg5[%c0_25, %c0_26], %79 {strides = array<i32>} : memref<8x1xf32, #tpu.memory_space<vmem>>, vector<8x1xf32>,
    %c0_i32_27 = arith.constant 0 : i32
    %81 = arith.cmpi eq, %arg0, %c0_i32_27 : i32
    %82 = arith.extui %81 : i1 to i32
    %c0_i32_28 = arith.constant 0 : i32
    %83 = arith.cmpi ne, %82, %c0_i32_28 : i32
    scf.if %83 {
      %c0_29 = arith.constant 0 : index
      %c0_30 = arith.constant 0 : index
      %84 = vector.load %arg5[%c0_29, %c0_30] : memref<8x1xf32, #tpu.memory_space<vmem>>, vector<8x1xf32>
      %85 = vector.shape_cast %84 : vector<8x1xf32> to vector<1x8x1xf32>
      %cst_31 = arith.constant dense<0.000000e+00> : vector<1xf32>
      %86 = vector.multi_reduction <add>, %85, %cst_31 [1, 2] : vector<1x8x1xf32> to vector<1xf32>
      %87 = vector.shape_cast %86 : vector<1xf32> to vector<1x1x1xf32>
      %88 = vector.extract %87[0, 0, 0] : f32 from vector<1x1x1xf32>
      %89 = vector.broadcast %88 : f32 to vector<1x1xf32>
      %cst_32 = arith.constant 1.250000e-01 : f32
      %90 = vector.broadcast %cst_32 : f32 to vector<1x1xf32>
      %91 = arith.mulf %89, %90 : vector<1x1xf32>
      %c0_33 = arith.constant 0 : index
      %c0_34 = arith.constant 0 : index
      %92 = vector.load %arg4[%c0_33, %c0_34] : memref<1x1xf32, #tpu.memory_space<vmem>>, vector<1x1xf32>
      tpu.vector_store %arg4[%c0_33, %c0_34], %91 {strides = array<i32>} : memref<1x1xf32, #tpu.memory_space<vmem>>, vector<1x1xf32>,
    } else {
    }
    return
  }
  func.func @transform_0(%arg0: i32) -> (i32, i32, i32) {
    %c0_i32 = arith.constant 0 : i32
    %c0_i32_0 = arith.constant 0 : i32
    %c0_i32_1 = arith.constant 0 : i32
    return %c0_i32, %c0_i32_0, %arg0 : i32, i32, i32
  }
  func.func @transform_1(%arg0: i32) -> (i32, i32) {
    %c0_i32 = arith.constant 0 : i32
    %c0_i32_0 = arith.constant 0 : i32
    return %c0_i32, %arg0 : i32, i32
  }
  func.func @transform_2(%arg0: i32) -> i32 {
    %c0_i32 = arith.constant 0 : i32
    %c0_i32_0 = arith.constant 0 : i32
    return %c0_i32 : i32
  }
  func.func @transform_3(%arg0: i32) -> (i32, i32) {
    %c0_i32 = arith.constant 0 : i32
    %c0_i32_0 = arith.constant 0 : i32
    %c0_i32_1 = arith.constant 0 : i32
    return %c0_i32, %c0_i32_0 : i32, i32
  }
}

</mosaic_0001>

<llo_original>
// kernel: tpu_custom_call.1
$region0: #{tpu_custom_call.1}
  #allocation0 [shape = 'u32[]', space=smem, size = 0x4, offset = 0x4, fixed_abs, tag = 'smem constant byte address 0x4 - core index']
  #allocation1 [shape = 'u32[144,128]{1,0:T(1,128)}', space=vmem, size = 0x12000, scoped, tag = 'internal scratch']
  #allocation2 [shape = 'f32[8,1]{1,0:T(8,128)}', space=vmem, size = 0x1000, scoped, tag = 'scratch operand']
  %s0 = inlined_call_operand.vmem [shape: f32[4,8,1], index: 0, kind: input, shape index: {}]
  %s1 = inlined_call_operand.vmem [shape: s32[8,1], index: 1, kind: input, shape index: {}]
  %s2 = inlined_call_operand.vmem [shape: f32[4], index: 2, kind: input, shape index: {}]
  %s3 = inlined_call_operand.hbm [shape: f32[1,1], index: 3, kind: output, shape index: {}]
  %s4 = sld [smem:[#allocation0]]
  $region34: #{tpu_custom_call.1} parent=0
    _
  %s6 = ssub.s32 1, %s4
  %s7 = scalar_select 0, %s6, %s4
  $region1: #{tpu_custom_call.1} parent=0
    #allocation3 [shape = 'u8[512]{0}', space=smem, size = 0x200, scoped, tag = 'input window, operand 2, single buffered']
    #allocation4 [shape = 's32[1]{0}', space=sflag, size = 0x4, scoped, tag = 'scoped memory for tpu_custom_call.1']
    #allocation5 [shape = 's32[1]{0}', space=sflag, size = 0x4, scoped, tag = 'scoped memory for tpu_custom_call.1']
    #allocation6 [shape = 'u8[512]{0}', space=vmem, size = 0x400, scoped, tag = 'output window, operand 0, single buffered']
    %8 = vsyncpa [#allocation5], 0
    %9 = vsyncpa [#allocation4], 0
    // Predicated region
    $region2: #{tpu_custom_call.1} parent=1 // pred_check
      _
    $region3: #{tpu_custom_call.1} parent=1 // pred_check_branch
      %11 = sbr.rel (0) target = $region5
    $region4: #{tpu_custom_call.1} parent=1 // pred_region
      _
    $region5: #{tpu_custom_call.1} parent=1 // pred_fallthru
      _
    // Predicated region
    $region6: #{tpu_custom_call.1} parent=1 // pred_check
      _
    $region7: #{tpu_custom_call.1} parent=1 // pred_check_branch
      %13 = sbr.rel (0) target = $region9
    $region8: #{tpu_custom_call.1} parent=1 // pred_region
      _
    $region9: #{tpu_custom_call.1} parent=1 // pred_fallthru
      _
    // Predicated region
    $region10: #{tpu_custom_call.1} parent=1 // pred_check
      _
    $region11: #{tpu_custom_call.1} parent=1 // pred_check_branch
      %15 = sbr.rel (0) target = $region13
    $region12: #{tpu_custom_call.1} parent=1 // pred_region
      %s17 = ssub.s32 16, 16
      %18 = vsyncadd [#allocation5], %s17
      %s20 = sshll.u32 %s2, 4
      %s21 = int_to_ptr.vmem [resolvable:$true] %s20
      %23 = dma.vmem_to_smem %s21, 16, [#allocation3], [#allocation5]
    $region13: #{tpu_custom_call.1} parent=1 // pred_fallthru
      _
    // Predicated region
    $region14: #{tpu_custom_call.1} parent=1 // pred_check
      _
    $region15: #{tpu_custom_call.1} parent=1 // pred_check_branch
      %25 = sbr.rel (0) target = $region17
    $region16: #{tpu_custom_call.1} parent=1 // pred_region
      %26 = dma.done [#allocation5], 16
    $region17: #{tpu_custom_call.1} parent=1 // pred_fallthru
      _
    %27 = sfence
    %p28 = scmp.eq.s32.totalorder 0, 0
    // Predicated region
    $region18: #{tpu_custom_call.1} parent=1 // pred_check
      %p29 = pneg %p28
    $region19: #{tpu_custom_call.1} parent=1 // pred_check_branch
      %31 = sbr.rel (%p29) target = $region21
    $region20: #{tpu_custom_call.1} parent=1 // pred_region
      %vm32 = vcmask 7168
      %33 = vst.msk [vmem:[#allocation2] sm:$0xff] %vm32, 0.0
    $region21: #{tpu_custom_call.1} parent=1 // pred_fallthru
      _
    %v34 = vld [vmem:[#allocation2] sm:$0xff]
    %v35 = vld [vmem:[%s1] sm:$0xff]
    %v36 = vld [vmem:[%s0] sm:$0xff]
    %s37 = scalar_lea.vmem %s0, 8
    %v38 = vld [vmem:[%s37] sm:$0xff]
    %s39 = scalar_lea.vmem %s0, 16
    %v40 = vld [vmem:[%s39] sm:$0xff]
    %s41 = scalar_lea.vmem %s0, 24
    %v42 = vld [vmem:[%s41] sm:$0xff]
    %v43 = vmax.f32 %v36, %v38
    %v44 = vmax.f32 %v43, %v40
    %v45 = vmax.f32 %v44, %v42
    %v46 = vsub.f32 %v36, %v45
    %v47 = vmul.f32 %v46, 1.442695
    %v48 = vpow.pop %v47
    %v49 = vsub.f32 %v38, %v45
    %v50 = vmul.f32 %v49, 1.442695
    %v51 = vpow.pop %v50
    %v52 = vadd.f32 %v48, %v51
    %v53 = vsub.f32 %v40, %v45
    %v54 = vmul.f32 %v53, 1.442695
    %v55 = vpow.pop %v54
    %v56 = vadd.f32 %v52, %v55
    %v57 = vsub.f32 %v42, %v45
    %v58 = vmul.f32 %v57, 1.442695
    %v59 = vpow.pop %v58
    %v60 = vadd.f32 %v56, %v59
    %v61 = vlog2.pop %v60
    %v62 = vmul.f32 %v61, 0.6931472
    %v63 = vadd.f32 %v45, %v62
    %vm64 = vcmp.eq.s32.totalorder %v35, 0
    %v65 = vsel %vm64, %v36, 0.0
    %s66 = sld [smem:[#allocation3]]
    %v67 = vstv %s66
    %v68 = vsel %vm64, %v67, 0.0
    %vm69 = vcmp.eq.s32.totalorder %v35, 1
    %v70 = vsel %vm69, %v38, %v65
    %s71 = sld [smem:[#allocation3 + $0x1]]
    %v72 = vstv %s71
    %v73 = vsel %vm69, %v72, %v68
    %vm74 = vcmp.eq.s32.totalorder %v35, 2
    %v75 = vsel %vm74, %v40, %v70
    %s76 = sld [smem:[#allocation3 + $0x2]]
    %v77 = vstv %s76
    %v78 = vsel %vm74, %v77, %v73
    %vm79 = vcmp.eq.s32.totalorder %v35, 3
    %v80 = vsel %vm79, %v42, %v75
    %s81 = sld [smem:[#allocation3 + $0x3]]
    %v82 = vstv %s81
    %v83 = vsel %vm79, %v82, %v78
    %v84 = vsub.f32 %v80, %v63
    %v85 = vsub.f32 0.0, %v84
    %v86 = vmul.f32 %v84, 1.442695
    %v87 = vpow.pop %v86
    %v88 = vsub.f32 1.0, %v87
    %v89 = vmul.f32 %v88, %v88
    %v90 = vmul.f32 %v83, %v89
    %v91 = vmul.f32 %v90, %v85
    %v92 = vlaneseq
    %v93 = vshrl.u32 %v92, 7
    %v94 = vlaneseq
    %v95 = vand.u32 %v94, 127
    %v96 = vstv 0
    %v97 = vadd.s32 %v95, %v96
    %v98 = vadd.s32 %v93, %v97
    %vm99 = vcmp.lt.s32.totalorder %v97, 1
    %vm100 = vcmp.lt.s32.totalorder %v98, 8
    %vm101 = vmand %vm99, %vm100
    %v102 = vsel %vm101, %v91, 0.0
    %v103 = vadd.f32 %v34, %v102
    %vm104 = vcmask 7168
    %105 = vst.msk [vmem:[#allocation2] sm:$0xff] %vm104, %v103
    // Predicated region
    $region22: #{tpu_custom_call.1} parent=1 // pred_check
      %p106 = pneg %p28
    $region23: #{tpu_custom_call.1} parent=1 // pred_check_branch
      %108 = sbr.rel (%p106) target = $region25
    $region24: #{tpu_custom_call.1} parent=1 // pred_region
      %v109 = vld [vmem:[#allocation2] sm:$0xff]
      %v110 = vsel %vm104, %v109, 0.0
      %111 = vadd.xlane.f32.xlu0 %v110
      %v112 = vpop.xlane.xlu0 %111
      %v113 = vrot.slane %v112, 4
      %v114 = vadd.f32 %v112, %v113
      %v115 = vrot.slane %v114, 2
      %v116 = vadd.f32 %v114, %v115
      %v117 = vrot.slane %v116, 1
      %v118 = vadd.f32 %v116, %v117
      %s119 = vtos %v118
      %v120 = vstv %s119
      %v121 = vmul.f32 %v120, 0.125
      %vm122 = vcmask 0
      %123 = vst.msk [vmem:[#allocation6] sm:$0x1] %vm122, %v121
    $region25: #{tpu_custom_call.1} parent=1 // pred_fallthru
      _
    // Predicated region
    $region26: #{tpu_custom_call.1} parent=1 // pred_check
      _
    $region27: #{tpu_custom_call.1} parent=1 // pred_check_branch
      %125 = sbr.rel (0) target = $region29
    $region28: #{tpu_custom_call.1} parent=1 // pred_region
      %s127 = ssub.s32 16, 16
      %128 = vsyncadd [#allocation4], %s127
      %s130 = sshll.u32 [#allocation6], 4
      %s131 = int_to_ptr.vmem [resolvable:$true] %s130
      %133 = dma.vmem_to_hbm [thread:$0]  %s131, 16, %s3, [#allocation4]
    $region29: #{tpu_custom_call.1} parent=1 // pred_fallthru
      _
    // Predicated region
    $region30: #{tpu_custom_call.1} parent=1 // pred_check
      _
    $region31: #{tpu_custom_call.1} parent=1 // pred_check_branch
      %135 = sbr.rel (0) target = $region33
    $region32: #{tpu_custom_call.1} parent=1 // pred_region
      %136 = dma.done [#allocation4], 16
    $region33: #{tpu_custom_call.1} parent=1 // pred_fallthru
      _
    %137 = vsyncpa [#allocation4], 1
    %138 = vsyncpa [#allocation5], 1

</llo_original>
